<compile_context>
chip_gen: v7x
topology: tpu7x:2x2x1
jax: 0.10.0
libtpu: 0.0.40
codegen_flags: <defaults>
</compile_context>

<pallas_src>
import jax
import jax.numpy as jnp
from jax.experimental import pallas as pl
from jax.experimental.pallas import tpu as pltpu


def _cast_kernel(x_ref, o_ref):
    # Elementwise cast to float32 on the VPU (full lane-width tiles).
    o_ref[...] = x_ref[...].astype(jnp.float32)


def _round_up(x, m):
    return ((x + m - 1) // m) * m


def _pick_cols(n):
    """Lane-dense (multiple-of-128) column count that exactly divides n,
    or None if no such divisor exists (then we fall back to XLA)."""
    for cols in (1024, 512, 256, 128):
        if n % cols == 0:
            return cols
    return None


def _tile_budget():
    """Per-generation (tile rows cap, vmem_limit_bytes)."""
    try:
        vmem = pltpu.get_tpu_info().vmem_capacity_bytes
        if vmem is not None and vmem <= 64 * 1024 * 1024:   # v7x-class
            return 1024, 40 * 1024 * 1024
    except Exception:
        # Conservative default if hardware info is unavailable.
        return 1024, 40 * 1024 * 1024
    return 2048, 64 * 1024 * 1024                            # v5e / v6e


_SMALL_N = 1 << 20  # below ~1M elements, XLA's fused convert wins outright


def dummy_body_forward(x, *, force_kernel=False):
    """Equivalent of DummyBody.forward: cast input to float32 (any rank)."""
    n = x.size
    if n == 0:
        return x.astype(jnp.float32)

    cols = _pick_cols(n)
    if cols is None or (n < _SMALL_N and not force_kernel):
        # Fast path: tiny inputs, or n with no multiple-of-128 divisor.
        # Any pad/slice/concat around a kernel would add full extra HBM
        # passes; XLA's fused convert is already at the streaming roofline.
        return x.astype(jnp.float32)

    rows = n // cols
    tile_cap, vmem_limit = _tile_budget()
    # Row tile: multiple of 16 (bf16 sublane packing), capped per chip.
    tile_r = min(tile_cap, _round_up(rows, 16))

    x2d = x.reshape(rows, cols)           # contiguous reshape: no copy
    grid = pl.cdiv(rows, tile_r)          # ragged last block -> masked by Pallas

    out2d = pl.pallas_call(
        _cast_kernel,
        out_shape=jax.ShapeDtypeStruct((rows, cols), jnp.float32),
        grid=(grid,),
        in_specs=[pl.BlockSpec((tile_r, cols), lambda i: (i, 0))],
        out_specs=pl.BlockSpec((tile_r, cols), lambda i: (i, 0)),
        compiler_params=pltpu.CompilerParams(
            dimension_semantics=("parallel",),
            vmem_limit_bytes=vmem_limit,
        ),
        cost_estimate=pl.CostEstimate(
            flops=0,
            transcendentals=0,
            bytes_accessed=n * (x.dtype.itemsize + 4),
        ),
    )(x2d)

    return out2d.reshape(x.shape)


class DummyBody:
    """JAX/Pallas mirror of the PyTorch DummyBody module (no parameters)."""

    def __init__(self, state_dim):
        self.feature_dim = state_dim

    def __call__(self, x):
        return dummy_body_forward(x)


if __name__ == "__main__":
    key = jax.random.PRNGKey(0)
    # Small NCHW input consistent with a conv-style body: (B, C, H, W).
    B, C, H, W = 2, 4, 16, 16
    # bf16 input so the float32 cast is observable.
    x = jax.random.normal(key, (B, C, H, W), dtype=jnp.bfloat16)
    ref = x.astype(jnp.float32)

    body = DummyBody(state_dim=C * H * W)

    # 1) Default (auto) path: tiny input -> XLA fast path.
    out_auto = jax.block_until_ready(body(x))
    assert out_auto.shape == (B, C, H, W) and out_auto.dtype == jnp.float32
    assert jnp.array_equal(out_auto, ref), "auto path mismatch vs reference"

    # 2) Force the Pallas kernel so it is actually exercised (2 rows x 1024
    #    lanes against a 16-row block -> masked ragged block).
    out_kern = jax.block_until_ready(dummy_body_forward(x, force_kernel=True))
    assert out_kern.shape == (B, C, H, W) and out_kern.dtype == jnp.float32
    assert jnp.array_equal(out_kern, ref), "Pallas cast mismatch vs reference"

    # 3) Larger streaming case through the kernel, rows not a multiple of the
    #    row tile (ragged last block, no padding, no output slice).
    y = jax.random.normal(jax.random.PRNGKey(1), (300, 1024), dtype=jnp.bfloat16)
    outy = jax.block_until_ready(dummy_body_forward(y, force_kernel=True))
    assert outy.dtype == jnp.float32 and outy.shape == (300, 1024)
    assert jnp.array_equal(outy, y.astype(jnp.float32))

    # 4) Odd size with no multiple-of-128 divisor -> XLA fallback path.
    z = jax.random.normal(jax.random.PRNGKey(2), (777,), dtype=jnp.bfloat16)
    outz = jax.block_until_ready(dummy_body_forward(z))
    assert outz.dtype == jnp.float32 and outz.shape == (777,)
    assert jnp.array_equal(outz, z.astype(jnp.float32))

    print("KERNEL_OK")
</pallas_src>

<mosaic_0001>
module attributes {stable_mosaic.version = 11 : i64} {
  func.func @_cast_kernel(%arg0: i32, %arg1: memref<16x1024xbf16, #tpu.memory_space<vmem>>, %arg2: memref<16x1024xf32, #tpu.memory_space<vmem>>) attributes {dimension_semantics = [#tpu.dimension_semantics<parallel>], iteration_bounds = array<i64: 1>, scalar_prefetch = 0 : i64, scratch_operands = 0 : i64, tpu.core_type = #tpu.core_type<tc>, window_params = [{transform_indices = @transform_0, window_bounds = array<i64: 16, 1024>}, {transform_indices = @transform_1, window_bounds = array<i64: 16, 1024>}]} {
    %c0 = arith.constant 0 : index
    %c0_0 = arith.constant 0 : index
    %0 = vector.load %arg1[%c0, %c0_0] : memref<16x1024xbf16, #tpu.memory_space<vmem>>, vector<16x1024xbf16>
    %1 = arith.extf %0 : vector<16x1024xbf16> to vector<16x1024xf32>
    %c0_1 = arith.constant 0 : index
    %c0_2 = arith.constant 0 : index
    %2 = vector.load %arg2[%c0_1, %c0_2] : memref<16x1024xf32, #tpu.memory_space<vmem>>, vector<16x1024xf32>
    tpu.vector_store %arg2[%c0_1, %c0_2], %1 {strides = array<i32>} : memref<16x1024xf32, #tpu.memory_space<vmem>>, vector<16x1024xf32>,
    return
  }
  func.func @transform_0(%arg0: i32) -> (i32, i32) {
    %c0_i32 = arith.constant 0 : i32
    %c0_i32_0 = arith.constant 0 : i32
    return %arg0, %c0_i32 : i32, i32
  }
  func.func @transform_1(%arg0: i32) -> (i32, i32) {
    %c0_i32 = arith.constant 0 : i32
    %c0_i32_0 = arith.constant 0 : i32
    return %arg0, %c0_i32 : i32, i32
  }
}

</mosaic_0001>

<llo_original>
// kernel: tpu_custom_call.1
$region0: #{tpu_custom_call.1}
  #allocation0 [shape = 'u32[]', space=smem, size = 0x4, offset = 0x4, fixed_abs, tag = 'smem constant byte address 0x4 - core index']
  #allocation1 [shape = 'u32[144,128]{1,0:T(1,128)}', space=vmem, size = 0x12000, scoped, tag = 'internal scratch']
  %s0 = inlined_call_operand.hbm [shape: bf16[2,1024], index: 0, kind: input, shape index: {}]
  %s1 = inlined_call_operand.hbm [shape: f32[2,1024], index: 1, kind: output, shape index: {}]
  %s2 = sld [smem:[#allocation0]]
  $region18: #{tpu_custom_call.1} parent=0
    _
  %s4 = ssub.s32 1, %s2
  %s5 = scalar_select 0, %s4, %s2
  $region1: #{tpu_custom_call.1} parent=0
    #allocation2 [shape = 'u8[32768]{0}', space=vmem, size = 0x8000, scoped, tag = 'input window, operand 0, single buffered']
    #allocation3 [shape = 's32[1]{0}', space=sflag, size = 0x4, scoped, tag = 'scoped memory for tpu_custom_call.1']
    #allocation4 [shape = 's32[1]{0}', space=sflag, size = 0x4, scoped, tag = 'scoped memory for tpu_custom_call.1']
    #allocation5 [shape = 'u8[65536]{0}', space=vmem, size = 0x10000, scoped, tag = 'output window, operand 0, single buffered']
    %6 = vsyncpa [#allocation3], 0
    %7 = vsyncpa [#allocation4], 0
    // Predicated region
    $region2: #{tpu_custom_call.1} parent=1 // pred_check
      _
    $region3: #{tpu_custom_call.1} parent=1 // pred_check_branch
      %9 = sbr.rel (0) target = $region5
    $region4: #{tpu_custom_call.1} parent=1 // pred_region
      %s11 = ssub.s32 1024, 128
      %12 = vsyncadd [#allocation3], %s11
      %s13 = sshll.u32 [#allocation2], 4
      %s14 = int_to_ptr.vmem [resolvable:$true] %s13
      %19 = dma.hbm_to_vmem [thread:$0]  %s0, 128, %s14, [#allocation3], 128, 128, 8
    $region5: #{tpu_custom_call.1} parent=1 // pred_fallthru
      _
    // Predicated region
    $region6: #{tpu_custom_call.1} parent=1 // pred_check
      _
    $region7: #{tpu_custom_call.1} parent=1 // pred_check_branch
      %21 = sbr.rel (0) target = $region9
    $region8: #{tpu_custom_call.1} parent=1 // pred_region
      %22 = dma.done [#allocation3], 1024
    $region9: #{tpu_custom_call.1} parent=1 // pred_fallthru
      _
    %v23 = vld [vmem:[#allocation2] sm:$0xff]
    %v24 = vld [vmem:[#allocation2 + $0x8] sm:$0xff]
    %v25 = vld [vmem:[#allocation2 + $0x10] sm:$0xff]
    %v26 = vld [vmem:[#allocation2 + $0x18] sm:$0xff]
    %v27 = vld [vmem:[#allocation2 + $0x20] sm:$0xff]
    %v28 = vld [vmem:[#allocation2 + $0x28] sm:$0xff]
    %v29 = vld [vmem:[#allocation2 + $0x30] sm:$0xff]
    %v30 = vld [vmem:[#allocation2 + $0x38] sm:$0xff]
    %v31 = vunpack.c.l.bf16 %v23
    %v32 = vunpack.c.h.bf16 %v23
    %v33 = vunpack.c.l.bf16 %v24
    %v34 = vunpack.c.h.bf16 %v24
    %v35 = vunpack.c.l.bf16 %v25
    %v36 = vunpack.c.h.bf16 %v25
    %v37 = vunpack.c.l.bf16 %v26
    %v38 = vunpack.c.h.bf16 %v26
    %v39 = vunpack.c.l.bf16 %v27
    %v40 = vunpack.c.h.bf16 %v27
    %v41 = vunpack.c.l.bf16 %v28
    %v42 = vunpack.c.h.bf16 %v28
    %v43 = vunpack.c.l.bf16 %v29
    %v44 = vunpack.c.h.bf16 %v29
    %v45 = vunpack.c.l.bf16 %v30
    %v46 = vunpack.c.h.bf16 %v30
    %47 = vst [vmem:[#allocation5] sm:$0xff] %v31
    %48 = vst [vmem:[#allocation5 + $0x8] sm:$0xff] %v32
    %49 = vst [vmem:[#allocation5 + $0x10] sm:$0xff] %v33
    %50 = vst [vmem:[#allocation5 + $0x18] sm:$0xff] %v34
    %51 = vst [vmem:[#allocation5 + $0x20] sm:$0xff] %v35
    %52 = vst [vmem:[#allocation5 + $0x28] sm:$0xff] %v36
    %53 = vst [vmem:[#allocation5 + $0x30] sm:$0xff] %v37
    %54 = vst [vmem:[#allocation5 + $0x38] sm:$0xff] %v38
    %55 = vst [vmem:[#allocation5 + $0x40] sm:$0xff] %v39
    %56 = vst [vmem:[#allocation5 + $0x48] sm:$0xff] %v40
    %57 = vst [vmem:[#allocation5 + $0x50] sm:$0xff] %v41
    %58 = vst [vmem:[#allocation5 + $0x58] sm:$0xff] %v42
    %59 = vst [vmem:[#allocation5 + $0x60] sm:$0xff] %v43
    %60 = vst [vmem:[#allocation5 + $0x68] sm:$0xff] %v44
    %61 = vst [vmem:[#allocation5 + $0x70] sm:$0xff] %v45
    %62 = vst [vmem:[#allocation5 + $0x78] sm:$0xff] %v46
    // Predicated region
    $region10: #{tpu_custom_call.1} parent=1 // pred_check
      _
    $region11: #{tpu_custom_call.1} parent=1 // pred_check_branch
      %64 = sbr.rel (0) target = $region13
    $region12: #{tpu_custom_call.1} parent=1 // pred_region
      %s66 = ssub.s32 2048, 256
      %67 = vsyncadd [#allocation4], %s66
      %s68 = sshll.u32 [#allocation5], 4
      %s69 = int_to_ptr.vmem [resolvable:$true] %s68
      %74 = dma.vmem_to_hbm [thread:$0]  %s69, 256, %s1, [#allocation4], 256, 256, 16
    $region13: #{tpu_custom_call.1} parent=1 // pred_fallthru
      _
    // Predicated region
    $region14: #{tpu_custom_call.1} parent=1 // pred_check
      _
    $region15: #{tpu_custom_call.1} parent=1 // pred_check_branch
      %76 = sbr.rel (0) target = $region17
    $region16: #{tpu_custom_call.1} parent=1 // pred_region
      %77 = dma.done [#allocation4], 2048
    $region17: #{tpu_custom_call.1} parent=1 // pred_fallthru
      _
    %78 = vsyncpa [#allocation3], 1
    %79 = vsyncpa [#allocation4], 1

</llo_original>
